<compile_context>
chip_gen: v7x
topology: tpu7x:2x2x1
jax: 0.10.0
libtpu: 0.0.40
codegen_flags: <defaults>
</compile_context>

<pallas_src>
import functools

import jax
import jax.numpy as jnp
from jax.experimental import pallas as pl
from jax.experimental.pallas import tpu as pltpu

_LANE = 128
_MAX_COLS = 8192
_MIN_PALLAS_BYTES = 256 * 1024       # below this, fused XLA elementwise wins


def _ddsigmoid_ref(x: jax.Array) -> jax.Array:
    """Plain-JAX reference / fallback path (exact module semantics)."""
    xf = x.astype(jnp.float32)
    s = jax.nn.sigmoid(0.1 * xf)
    y = 0.01 * s * (1.0 - s) * (1.0 - 2.0 * s)
    return y.astype(x.dtype)


def _tpu_config():
    """Returns (tile_byte_budget, vmem_limit_bytes, promote_subword_to_f32)."""
    vmem_bytes = None
    try:
        vmem_bytes = int(pltpu.get_tpu_info().vmem_capacity_bytes)
    except Exception:
        vmem_bytes = None
    kind = ""
    try:
        kind = jax.devices()[0].device_kind.lower()
    except Exception:
        kind = ""

    # v7x: 64 MiB VMEM/TC but 3.2 TB/s HBM -> bigger tiles to amortize the
    # ~0.35us per-grid-step overhead.  v5e/v6e: 2 MiB tiles already sit near
    # the HBM roofline.
    is_v7 = (vmem_bytes is not None and vmem_bytes <= 64 * 1024 * 1024) or ("v7" in kind)
    if is_v7:
        tile_bytes = 6 * 1024 * 1024          # ~24 MiB dbl-buffered in+out
        vmem_limit = 48 * 1024 * 1024
    else:
        tile_bytes = 2 * 1024 * 1024          # ~8 MiB dbl-buffered in+out
        vmem_limit = 32 * 1024 * 1024

    # v5 and older have no bf16 VPU/EUP -> promote sub-32-bit math to f32.
    promote_subword = (kind == "") or any(v in kind for v in ("v2", "v3", "v4", "v5"))
    return tile_bytes, vmem_limit, promote_subword


def _ddsigmoid_kernel(x_ref, o_ref, *, compute_dtype):
    x = x_ref[...].astype(compute_dtype)
    # With s = sigmoid(0.1x) and t = tanh(0.05x) = 2s - 1:
    #   0.01*s*(1-s)*(1-2s) == -0.0025 * t * (1 - t*t)
    # One transcendental (tanh, EUP) per element instead of exp + reciprocal.
    t = jnp.tanh(0.05 * x)
    y = -0.0025 * t * (1.0 - t * t)
    o_ref[...] = y.astype(o_ref.dtype)


def ddsigmoid_out(x: jax.Array, *, force_pallas: bool = False) -> jax.Array:
    """Pallas implementation of DDSigmoid_out.forward."""
    orig_shape = x.shape
    orig_dtype = x.dtype
    itemsize = jnp.dtype(orig_dtype).itemsize
    n = x.size

    if n == 0:
        return x
    # No-padding policy: if n is not lane-divisible, pad+slice would add a full
    # extra HBM read+write pair around a memory-bound kernel -> fused XLA wins.
    if n % _LANE != 0:
        return _ddsigmoid_ref(x)
    if (not force_pallas) and (n * itemsize < _MIN_PALLAS_BYTES):
        return _ddsigmoid_ref(x)

    tile_bytes, vmem_limit, promote_subword = _tpu_config()

    # ---- lane-dense 2D slab with ZERO padding -----------------------------
    # cols = largest multiple-of-128 divisor of n, capped at 8192.
    m = n // _LANE
    cols_factor = 1
    for d in range(min(_MAX_COLS // _LANE, m), 0, -1):
        if m % d == 0:
            cols_factor = d
            break
    cols = cols_factor * _LANE
    rows = n // cols
    x2 = x.reshape(rows, cols)

    # ---- row block: byte-budgeted, sublane aligned, >= ~4 grid steps -------
    sublane = {4: 8, 2: 16, 1: 32}.get(itemsize, 8)
    budget_rows = max(sublane, (tile_bytes // (cols * itemsize)) // sublane * sublane)
    quarter = (rows + 3) // 4                               # aim for >= 4 steps
    target_rows = max(sublane, ((quarter + sublane - 1) // sublane) * sublane)
    block_rows = min(budget_rows, target_rows, rows)        # == rows (full dim) is legal
    grid = (pl.cdiv(rows, block_rows),)

    # ---- compute dtype ------------------------------------------------------
    if itemsize >= 4 or promote_subword:
        compute_dtype = jnp.float32
    else:
        compute_dtype = orig_dtype                          # bf16-native on v6e/v7x

    kernel = functools.partial(_ddsigmoid_kernel, compute_dtype=compute_dtype)

    out2 = pl.pallas_call(
        kernel,
        out_shape=jax.ShapeDtypeStruct((rows, cols), orig_dtype),
        grid_spec=pltpu.PrefetchScalarGridSpec(
            num_scalar_prefetch=0,
            grid=grid,
            in_specs=[pl.BlockSpec((block_rows, cols), lambda i: (i, 0))],
            out_specs=pl.BlockSpec((block_rows, cols), lambda i: (i, 0)),
        ),
        compiler_params=pltpu.CompilerParams(
            dimension_semantics=("parallel",),
            vmem_limit_bytes=vmem_limit,
        ),
        cost_estimate=pl.CostEstimate(
            flops=6 * n,
            transcendentals=n,
            bytes_accessed=2 * n * itemsize,
        ),
    )(x2)

    return out2.reshape(orig_shape)


if __name__ == "__main__":
    key = jax.random.PRNGKey(0)

    # Small NCHW input consistent with the module's typical use (forces Pallas).
    x_small = jax.random.normal(key, (2, 4, 16, 16), dtype=jnp.float32)
    out_small = jax.block_until_ready(ddsigmoid_out(x_small, force_pallas=True))
    ref_small = _ddsigmoid_ref(x_small)
    assert out_small.shape == x_small.shape
    assert out_small.dtype == x_small.dtype
    assert jnp.allclose(out_small, ref_small, atol=1e-6, rtol=1e-5)

    # Larger input: takes the auto Pallas path; n = 200704 = 28 * 7168, so the
    # slab is an exact reshape (no padding) with a 4-step pipelined grid.
    x_big = jax.random.normal(jax.random.PRNGKey(1), (4, 16, 56, 56), dtype=jnp.float32)
    out_big = jax.block_until_ready(ddsigmoid_out(x_big))
    ref_big = _ddsigmoid_ref(x_big)
    assert out_big.shape == x_big.shape
    assert jnp.allclose(out_big, ref_big, atol=1e-6, rtol=1e-5)

    # Non-lane-divisible size exercises the fused-XLA fallback (no padding path).
    x_odd = jax.random.normal(jax.random.PRNGKey(2), (3, 5, 7), dtype=jnp.float32)
    out_odd = jax.block_until_ready(ddsigmoid_out(x_odd))
    assert jnp.allclose(out_odd, _ddsigmoid_ref(x_odd), atol=1e-6, rtol=1e-5)

    print("KERNEL_OK")
</pallas_src>

<mosaic_0001>
module attributes {stable_mosaic.version = 11 : i64} {
  func.func @_ddsigmoid_kernel(%arg0: i32, %arg1: memref<1x2048xf32, #tpu.memory_space<vmem>>, %arg2: memref<1x2048xf32, #tpu.memory_space<vmem>>) attributes {dimension_semantics = [#tpu.dimension_semantics<parallel>], iteration_bounds = array<i64: 1>, scalar_prefetch = 0 : i64, scratch_operands = 0 : i64, tpu.core_type = #tpu.core_type<tc>, window_params = [{transform_indices = @transform_0, window_bounds = array<i64: 1, 2048>}, {transform_indices = @transform_1, window_bounds = array<i64: 1, 2048>}]} {
    %c0 = arith.constant 0 : index
    %c0_0 = arith.constant 0 : index
    %0 = vector.load %arg1[%c0, %c0_0] : memref<1x2048xf32, #tpu.memory_space<vmem>>, vector<1x2048xf32>
    %cst = arith.constant 5.000000e-02 : f32
    %1 = vector.broadcast %cst : f32 to vector<1x2048xf32>
    %2 = arith.mulf %1, %0 : vector<1x2048xf32>
    %3 = math.tanh %2 : vector<1x2048xf32>
    %cst_1 = arith.constant -2.500000e-03 : f32
    %4 = vector.broadcast %cst_1 : f32 to vector<1x2048xf32>
    %5 = arith.mulf %4, %3 : vector<1x2048xf32>
    %6 = arith.mulf %3, %3 : vector<1x2048xf32>
    %cst_2 = arith.constant 1.000000e+00 : f32
    %7 = vector.broadcast %cst_2 : f32 to vector<1x2048xf32>
    %8 = arith.subf %7, %6 : vector<1x2048xf32>
    %9 = arith.mulf %5, %8 : vector<1x2048xf32>
    %c0_3 = arith.constant 0 : index
    %c0_4 = arith.constant 0 : index
    %10 = vector.load %arg2[%c0_3, %c0_4] : memref<1x2048xf32, #tpu.memory_space<vmem>>, vector<1x2048xf32>
    tpu.vector_store %arg2[%c0_3, %c0_4], %9 {strides = array<i32>} : memref<1x2048xf32, #tpu.memory_space<vmem>>, vector<1x2048xf32>,
    return
  }
  func.func @transform_0(%arg0: i32) -> (i32, i32) {
    %c0_i32 = arith.constant 0 : i32
    %c0_i32_0 = arith.constant 0 : i32
    return %arg0, %c0_i32 : i32, i32
  }
  func.func @transform_1(%arg0: i32) -> (i32, i32) {
    %c0_i32 = arith.constant 0 : i32
    %c0_i32_0 = arith.constant 0 : i32
    return %arg0, %c0_i32 : i32, i32
  }
}

</mosaic_0001>

<llo_original>
// kernel: tpu_custom_call.1
$region0: #{tpu_custom_call.1}
  #allocation0 [shape = 'u32[]', space=smem, size = 0x4, offset = 0x4, fixed_abs, tag = 'smem constant byte address 0x4 - core index']
  #allocation1 [shape = 'u32[144,128]{1,0:T(1,128)}', space=vmem, size = 0x12000, scoped, tag = 'internal scratch']
  %s0 = inlined_call_operand.hbm [shape: f32[1,2048], index: 0, kind: input, shape index: {}]
  %s1 = inlined_call_operand.hbm [shape: f32[1,2048], index: 1, kind: output, shape index: {}]
  %s2 = sld [smem:[#allocation0]]
  $region18: #{tpu_custom_call.1} parent=0
    _
  %s4 = ssub.s32 1, %s2
  %s5 = scalar_select 0, %s4, %s2
  $region1: #{tpu_custom_call.1} parent=0
    #allocation2 [shape = 'u8[8192]{0}', space=vmem, size = 0x2000, scoped, tag = 'input window, operand 0, single buffered']
    #allocation3 [shape = 's32[1]{0}', space=sflag, size = 0x4, scoped, tag = 'scoped memory for tpu_custom_call.1']
    #allocation4 [shape = 's32[1]{0}', space=sflag, size = 0x4, scoped, tag = 'scoped memory for tpu_custom_call.1']
    #allocation5 [shape = 'u8[8192]{0}', space=vmem, size = 0x2000, scoped, tag = 'output window, operand 0, single buffered']
    %6 = vsyncpa [#allocation3], 0
    %7 = vsyncpa [#allocation4], 0
    // Predicated region
    $region2: #{tpu_custom_call.1} parent=1 // pred_check
      _
    $region3: #{tpu_custom_call.1} parent=1 // pred_check_branch
      %9 = sbr.rel (0) target = $region5
    $region4: #{tpu_custom_call.1} parent=1 // pred_region
      %s11 = ssub.s32 256, 256
      %12 = vsyncadd [#allocation3], %s11
      %s14 = sshll.u32 [#allocation2], 4
      %s15 = int_to_ptr.vmem [resolvable:$true] %s14
      %17 = dma.hbm_to_vmem [thread:$0]  %s0, 256, %s15, [#allocation3]
    $region5: #{tpu_custom_call.1} parent=1 // pred_fallthru
      _
    // Predicated region
    $region6: #{tpu_custom_call.1} parent=1 // pred_check
      _
    $region7: #{tpu_custom_call.1} parent=1 // pred_check_branch
      %19 = sbr.rel (0) target = $region9
    $region8: #{tpu_custom_call.1} parent=1 // pred_region
      %20 = dma.done [#allocation3], 256
    $region9: #{tpu_custom_call.1} parent=1 // pred_fallthru
      _
    %v21 = vld [vmem:[#allocation2] sm:$0xff]
    %v22 = vld [vmem:[#allocation2 + $0x8] sm:$0xff]
    %v23 = vmul.f32 %v21, 0.05
    %v24 = vmul.f32 %v22, 0.05
    %v25 = vtanh.pop %v23
    %v26 = vtanh.pop %v24
    %v27 = vmul.f32 %v25, -0.0025
    %v28 = vmul.f32 %v26, -0.0025
    %v29 = vmul.f32 %v25, %v25
    %v30 = vmul.f32 %v26, %v26
    %v31 = vsub.f32 1.0, %v29
    %v32 = vsub.f32 1.0, %v30
    %v33 = vmul.f32 %v27, %v31
    %v34 = vmul.f32 %v28, %v32
    %35 = vst [vmem:[#allocation5] sm:$0xff] %v33
    %36 = vst [vmem:[#allocation5 + $0x8] sm:$0xff] %v34
    // Predicated region
    $region10: #{tpu_custom_call.1} parent=1 // pred_check
      _
    $region11: #{tpu_custom_call.1} parent=1 // pred_check_branch
      %38 = sbr.rel (0) target = $region13
    $region12: #{tpu_custom_call.1} parent=1 // pred_region
      %s40 = ssub.s32 256, 256
      %41 = vsyncadd [#allocation4], %s40
      %s43 = sshll.u32 [#allocation5], 4
      %s44 = int_to_ptr.vmem [resolvable:$true] %s43
      %46 = dma.vmem_to_hbm [thread:$0]  %s44, 256, %s1, [#allocation4]
    $region13: #{tpu_custom_call.1} parent=1 // pred_fallthru
      _
    // Predicated region
    $region14: #{tpu_custom_call.1} parent=1 // pred_check
      _
    $region15: #{tpu_custom_call.1} parent=1 // pred_check_branch
      %48 = sbr.rel (0) target = $region17
    $region16: #{tpu_custom_call.1} parent=1 // pred_region
      %49 = dma.done [#allocation4], 256
    $region17: #{tpu_custom_call.1} parent=1 // pred_fallthru
      _
    %50 = vsyncpa [#allocation3], 1
    %51 = vsyncpa [#allocation4], 1

</llo_original>
